<compile_context>
chip_gen: v7x
topology: tpu7x:2x2x1
jax: 0.10.0
libtpu: 0.0.40
codegen_flags: <defaults>
</compile_context>

<pallas_src>
import math

import jax
import jax.numpy as jnp
from jax.experimental import pallas as pl
from jax.experimental.pallas import tpu as pltpu

_LANE = 128


def _round_up(x, m):
    return ((x + m - 1) // m) * m


def _elu(h):
    # ELU(alpha=1). min() keeps the untaken exp branch finite for large h.
    # (expm1 would save one VPU subtract; see header note on why exp-1 is kept.)
    return jnp.where(h > 0.0, h, jnp.exp(jnp.minimum(h, 0.0)) - 1.0)


def _make_autoencoder_kernel(n_layers, mm_dtype):
    def kernel(x_ref, *refs):
        # refs = [w0, b0, w1, b1, ..., o_ref]; weights already (D_in, D_out).
        o_ref = refs[-1]
        h = x_ref[...].astype(jnp.float32)
        for li in range(n_layers):
            w = refs[2 * li][...]        # (D_in, D_out) in mm_dtype (f32 or bf16)
            b = refs[2 * li + 1][...]    # (1, D_out) f32, sublane-broadcast
            # Single-pass MXU matmul in mm_dtype, f32 accumulation; bias + ELU f32.
            h = jnp.dot(h.astype(mm_dtype), w,
                        preferred_element_type=jnp.float32) + b
            h = _elu(h)
        o_ref[...] = h.astype(o_ref.dtype)
    return kernel


def prepare_params(params, *, use_bf16=False):
    """One-time (load-time) parameter transform — keep OUT of the forward path.

    params: list of (w, b), PyTorch Linear layout: w (out, in), b (out,).
    Returns (flat_params, d_out, d_out_padded) where flat_params is
    [w0, b0, w1, b1, ...]:
      * weights transposed to (in, out) so the kernel runs plain `h @ w`
        on the MXU (no in-kernel transpose / XLU vxpose),
      * biases reshaped to lane-dense (1, out) rows (always f32),
      * the final layer zero-padded along its output dim to a multiple of 128
        lanes so the kernel's output stores are unmasked vst,
      * weights optionally cast to bf16 (halves resident VMEM / weight DMA and
        avoids the multi-pass f32 MXU penalty; accumulation stays f32).
    """
    mm_dtype = jnp.bfloat16 if use_bf16 else jnp.float32
    n_layers = len(params)
    d_out = int(params[-1][0].shape[0])
    d_out_pad = _round_up(d_out, _LANE)

    flat = []
    for li, (w, b) in enumerate(params):
        wt = jnp.asarray(w, jnp.float32).T                # (in, out)
        b2 = jnp.asarray(b, jnp.float32).reshape(1, -1)   # (1, out)
        if li == n_layers - 1 and d_out_pad != d_out:
            pad = d_out_pad - d_out
            wt = jnp.pad(wt, ((0, 0), (0, pad)))          # zero cols -> ELU(0)=0
            b2 = jnp.pad(b2, ((0, 0), (0, pad)))
        flat.append(wt.astype(mm_dtype))
        flat.append(b2)
    return flat, d_out, d_out_pad


def _pick_batch_tile(batch, max_batch_tile):
    if batch <= 256:
        # Small batch: launch/overhead bound — single grid step, no tiling games.
        return batch
    # Large batch: guarantee >= 2 grid steps so the "parallel" axis can shard
    # across v7x's two TensorCores (no-op on single-TC v5e/v6e); keep the tile
    # a multiple of 8 sublanes.
    tb = min(max_batch_tile, _round_up(pl.cdiv(batch, 2), 8))
    return _round_up(tb, 8)


def autoencoder_forward(x, prepared, *, max_batch_tile=256):
    """x: (B, input_dim) f32. prepared: output of prepare_params()."""
    flat_params, d_out, d_out_pad = prepared
    B, d_in = x.shape
    n_layers = len(flat_params) // 2
    mm_dtype = flat_params[0].dtype

    tb = _pick_batch_tile(B, max_batch_tile)
    B_pad = _round_up(B, tb)
    if B_pad != B:
        x = jnp.pad(x, ((0, B_pad - B), (0, 0)))  # padded rows sliced off below

    # x / out are batch-tiled; weights & biases use constant index_maps so they
    # are DMA'd once and stay VMEM-resident across every batch tile.
    in_specs = [pl.BlockSpec((tb, d_in), lambda i: (i, 0))]
    param_bytes = 0
    for p in flat_params:
        in_specs.append(pl.BlockSpec(p.shape, lambda i: (0, 0)))
        param_bytes += p.size * p.dtype.itemsize

    # Explicit VMEM budget (v7x has only 64 MiB physical): double-buffered x/out
    # tiles + params (x2 pipeline buffers) + headroom for the widest f32
    # intermediate activation tile.
    max_width = max(max(int(w.shape[-1]) for w in flat_params[0::2]), d_in)
    footprint = (2 * tb * d_in * 4 + 2 * tb * d_out_pad * 4
                 + 2 * param_bytes + 4 * tb * max_width * 4)
    vmem_limit = min(64 << 20, max(32 << 20, int(1.5 * footprint)))

    out = pl.pallas_call(
        _make_autoencoder_kernel(n_layers, mm_dtype),
        out_shape=jax.ShapeDtypeStruct((B_pad, d_out_pad), jnp.float32),
        grid=(B_pad // tb,),
        in_specs=in_specs,
        out_specs=pl.BlockSpec((tb, d_out_pad), lambda i: (i, 0)),
        compiler_params=pltpu.CompilerParams(
            dimension_semantics=("parallel",),
            vmem_limit_bytes=vmem_limit),
    )(x, *flat_params)

    if B_pad != B or d_out_pad != d_out:
        out = out[:B, :d_out]
    return out


def _autoencoder_layer_dims(input_dim, num_layers, bottleneck_size):
    """Replicates the PyTorch module's layer-dimension construction."""
    assert num_layers % 2 == 0 and num_layers > 2, (
        "Number of layers should be an even number greater than 2.")

    def next_power_of_two(v):
        return 2 ** math.ceil(math.log2(v))

    dims = [input_dim]
    cur = input_dim
    for _ in range(num_layers // 2 - 1):
        nxt = next_power_of_two(cur // 2)
        dims.append(nxt)
        cur = nxt
    enc = dims + [bottleneck_size]
    dec = [bottleneck_size] + list(reversed(dims))
    layer_io = list(zip(enc[:-1], enc[1:])) + list(zip(dec[:-1], dec[1:]))
    return layer_io  # list of (fan_in, fan_out), each followed by ELU


def _ref_forward(x, params):
    h = x
    for w, b in params:
        h = h @ w.T + b
        h = jnp.where(h > 0.0, h, jnp.exp(jnp.minimum(h, 0.0)) - 1.0)
    return h


if __name__ == "__main__":
    # Small shapes consistent with the module: batch=8, input_dim=32,
    # num_layers=4, bottleneck_size=8  ->  layers 32->16->8->16->32, all ELU.
    B, input_dim, num_layers, bottleneck_size = 8, 32, 4, 8

    layer_io = _autoencoder_layer_dims(input_dim, num_layers, bottleneck_size)

    keys = jax.random.split(jax.random.PRNGKey(0), 2 * len(layer_io) + 1)
    x = jax.random.normal(keys[0], (B, input_dim), dtype=jnp.float32)

    # PyTorch-Linear-style uniform init (deterministic).
    params = []
    for li, (fan_in, fan_out) in enumerate(layer_io):
        bound = 1.0 / math.sqrt(fan_in)
        w = jax.random.uniform(keys[1 + 2 * li], (fan_out, fan_in),
                               jnp.float32, -bound, bound)
        b = jax.random.uniform(keys[2 + 2 * li], (fan_out,),
                               jnp.float32, -bound, bound)
        params.append((w, b))

    # One-time param prep, hoisted out of the forward path.  use_bf16=True is
    # the fast path for big shapes (relax tolerance to ~1e-2 if enabled).
    prepared = prepare_params(params, use_bf16=False)

    out = jax.block_until_ready(autoencoder_forward(x, prepared))

    ref = _ref_forward(x, params)
    assert out.shape == (B, input_dim), out.shape
    assert jnp.allclose(out, ref, atol=1e-5, rtol=1e-5), (out, ref)

    print("KERNEL_OK")
</pallas_src>

<mosaic_0001>
module attributes {stable_mosaic.version = 11 : i64} {
  func.func @kernel(%arg0: i32, %arg1: memref<8x32xf32, #tpu.memory_space<vmem>>, %arg2: memref<32x16xf32, #tpu.memory_space<vmem>>, %arg3: memref<1x16xf32, #tpu.memory_space<vmem>>, %arg4: memref<16x8xf32, #tpu.memory_space<vmem>>, %arg5: memref<1x8xf32, #tpu.memory_space<vmem>>, %arg6: memref<8x16xf32, #tpu.memory_space<vmem>>, %arg7: memref<1x16xf32, #tpu.memory_space<vmem>>, %arg8: memref<16x128xf32, #tpu.memory_space<vmem>>, %arg9: memref<1x128xf32, #tpu.memory_space<vmem>>, %arg10: memref<8x128xf32, #tpu.memory_space<vmem>>) attributes {dimension_semantics = [#tpu.dimension_semantics<parallel>], iteration_bounds = array<i64: 1>, scalar_prefetch = 0 : i64, scratch_operands = 0 : i64, tpu.core_type = #tpu.core_type<tc>, window_params = [{transform_indices = @transform_0, window_bounds = array<i64: 8, 32>}, {pipeline_mode = #tpu.pipeline_mode<synchronous>, transform_indices = @transform_1, window_bounds = array<i64: 32, 16>}, {pipeline_mode = #tpu.pipeline_mode<synchronous>, transform_indices = @transform_2, window_bounds = array<i64: 1, 16>}, {pipeline_mode = #tpu.pipeline_mode<synchronous>, transform_indices = @transform_3, window_bounds = array<i64: 16, 8>}, {pipeline_mode = #tpu.pipeline_mode<synchronous>, transform_indices = @transform_4, window_bounds = array<i64: 1, 8>}, {pipeline_mode = #tpu.pipeline_mode<synchronous>, transform_indices = @transform_5, window_bounds = array<i64: 8, 16>}, {pipeline_mode = #tpu.pipeline_mode<synchronous>, transform_indices = @transform_6, window_bounds = array<i64: 1, 16>}, {pipeline_mode = #tpu.pipeline_mode<synchronous>, transform_indices = @transform_7, window_bounds = array<i64: 16, 128>}, {pipeline_mode = #tpu.pipeline_mode<synchronous>, transform_indices = @transform_8, window_bounds = array<i64: 1, 128>}, {transform_indices = @transform_9, window_bounds = array<i64: 8, 128>}]} {
    %c0 = arith.constant 0 : index
    %c0_0 = arith.constant 0 : index
    %0 = vector.load %arg1[%c0, %c0_0] : memref<8x32xf32, #tpu.memory_space<vmem>>, vector<8x32xf32>
    %c0_1 = arith.constant 0 : index
    %c0_2 = arith.constant 0 : index
    %1 = vector.load %arg2[%c0_1, %c0_2] : memref<32x16xf32, #tpu.memory_space<vmem>>, vector<32x16xf32>
    %c0_3 = arith.constant 0 : index
    %c0_4 = arith.constant 0 : index
    %2 = vector.load %arg3[%c0_3, %c0_4] : memref<1x16xf32, #tpu.memory_space<vmem>>, vector<1x16xf32>
    %cst = arith.constant dense<0.000000e+00> : vector<8x16xf32>
    %3 = tpu.matmul %0, %1, %cst {dimension_numbers = #tpu.dot_dimension_numbers<[1], [0], [0], [1], [0, 0, 1, 1], [], []>} : vector<8x32xf32>, vector<32x16xf32>, vector<8x16xf32> -> vector<8x16xf32>
    %4 = vector.broadcast %2 : vector<1x16xf32> to vector<8x16xf32>
    %5 = arith.addf %3, %4 : vector<8x16xf32>
    %cst_5 = arith.constant 0.000000e+00 : f32
    %6 = vector.broadcast %cst_5 : f32 to vector<8x16xf32>
    %7 = arith.cmpf ogt, %5, %6 : vector<8x16xf32>
    %cst_6 = arith.constant 0.000000e+00 : f32
    %8 = vector.broadcast %cst_6 : f32 to vector<8x16xf32>
    %9 = arith.minimumf %5, %8 : vector<8x16xf32>
    %10 = math.exp %9 : vector<8x16xf32>
    %cst_7 = arith.constant 1.000000e+00 : f32
    %11 = vector.broadcast %cst_7 : f32 to vector<8x16xf32>
    %12 = arith.subf %10, %11 : vector<8x16xf32>
    %13 = arith.select %7, %5, %12 : vector<8x16xi1>, vector<8x16xf32>
    %c0_8 = arith.constant 0 : index
    %c0_9 = arith.constant 0 : index
    %14 = vector.load %arg4[%c0_8, %c0_9] : memref<16x8xf32, #tpu.memory_space<vmem>>, vector<16x8xf32>
    %c0_10 = arith.constant 0 : index
    %c0_11 = arith.constant 0 : index
    %15 = vector.load %arg5[%c0_10, %c0_11] : memref<1x8xf32, #tpu.memory_space<vmem>>, vector<1x8xf32>
    %cst_12 = arith.constant dense<0.000000e+00> : vector<8x8xf32>
    %16 = tpu.matmul %13, %14, %cst_12 {dimension_numbers = #tpu.dot_dimension_numbers<[1], [0], [0], [1], [0, 0, 1, 1], [], []>} : vector<8x16xf32>, vector<16x8xf32>, vector<8x8xf32> -> vector<8x8xf32>
    %17 = vector.broadcast %15 : vector<1x8xf32> to vector<8x8xf32>
    %18 = arith.addf %16, %17 : vector<8x8xf32>
    %cst_13 = arith.constant 0.000000e+00 : f32
    %19 = vector.broadcast %cst_13 : f32 to vector<8x8xf32>
    %20 = arith.cmpf ogt, %18, %19 : vector<8x8xf32>
    %cst_14 = arith.constant 0.000000e+00 : f32
    %21 = vector.broadcast %cst_14 : f32 to vector<8x8xf32>
    %22 = arith.minimumf %18, %21 : vector<8x8xf32>
    %23 = math.exp %22 : vector<8x8xf32>
    %cst_15 = arith.constant 1.000000e+00 : f32
    %24 = vector.broadcast %cst_15 : f32 to vector<8x8xf32>
    %25 = arith.subf %23, %24 : vector<8x8xf32>
    %26 = arith.select %20, %18, %25 : vector<8x8xi1>, vector<8x8xf32>
    %c0_16 = arith.constant 0 : index
    %c0_17 = arith.constant 0 : index
    %27 = vector.load %arg6[%c0_16, %c0_17] : memref<8x16xf32, #tpu.memory_space<vmem>>, vector<8x16xf32>
    %c0_18 = arith.constant 0 : index
    %c0_19 = arith.constant 0 : index
    %28 = vector.load %arg7[%c0_18, %c0_19] : memref<1x16xf32, #tpu.memory_space<vmem>>, vector<1x16xf32>
    %cst_20 = arith.constant dense<0.000000e+00> : vector<8x16xf32>
    %29 = tpu.matmul %26, %27, %cst_20 {dimension_numbers = #tpu.dot_dimension_numbers<[1], [0], [0], [1], [0, 0, 1, 1], [], []>} : vector<8x8xf32>, vector<8x16xf32>, vector<8x16xf32> -> vector<8x16xf32>
    %30 = vector.broadcast %28 : vector<1x16xf32> to vector<8x16xf32>
    %31 = arith.addf %29, %30 : vector<8x16xf32>
    %cst_21 = arith.constant 0.000000e+00 : f32
    %32 = vector.broadcast %cst_21 : f32 to vector<8x16xf32>
    %33 = arith.cmpf ogt, %31, %32 : vector<8x16xf32>
    %cst_22 = arith.constant 0.000000e+00 : f32
    %34 = vector.broadcast %cst_22 : f32 to vector<8x16xf32>
    %35 = arith.minimumf %31, %34 : vector<8x16xf32>
    %36 = math.exp %35 : vector<8x16xf32>
    %cst_23 = arith.constant 1.000000e+00 : f32
    %37 = vector.broadcast %cst_23 : f32 to vector<8x16xf32>
    %38 = arith.subf %36, %37 : vector<8x16xf32>
    %39 = arith.select %33, %31, %38 : vector<8x16xi1>, vector<8x16xf32>
    %c0_24 = arith.constant 0 : index
    %c0_25 = arith.constant 0 : index
    %40 = vector.load %arg8[%c0_24, %c0_25] : memref<16x128xf32, #tpu.memory_space<vmem>>, vector<16x128xf32>
    %c0_26 = arith.constant 0 : index
    %c0_27 = arith.constant 0 : index
    %41 = vector.load %arg9[%c0_26, %c0_27] : memref<1x128xf32, #tpu.memory_space<vmem>>, vector<1x128xf32>
    %cst_28 = arith.constant dense<0.000000e+00> : vector<8x128xf32>
    %42 = tpu.matmul %39, %40, %cst_28 {dimension_numbers = #tpu.dot_dimension_numbers<[1], [0], [0], [1], [0, 0, 1, 1], [], []>} : vector<8x16xf32>, vector<16x128xf32>, vector<8x128xf32> -> vector<8x128xf32>
    %43 = vector.broadcast %41 : vector<1x128xf32> to vector<8x128xf32>
    %44 = arith.addf %42, %43 : vector<8x128xf32>
    %cst_29 = arith.constant 0.000000e+00 : f32
    %45 = vector.broadcast %cst_29 : f32 to vector<8x128xf32>
    %46 = arith.cmpf ogt, %44, %45 : vector<8x128xf32>
    %cst_30 = arith.constant 0.000000e+00 : f32
    %47 = vector.broadcast %cst_30 : f32 to vector<8x128xf32>
    %48 = arith.minimumf %44, %47 : vector<8x128xf32>
    %49 = math.exp %48 : vector<8x128xf32>
    %cst_31 = arith.constant 1.000000e+00 : f32
    %50 = vector.broadcast %cst_31 : f32 to vector<8x128xf32>
    %51 = arith.subf %49, %50 : vector<8x128xf32>
    %52 = arith.select %46, %44, %51 : vector<8x128xi1>, vector<8x128xf32>
    %c0_32 = arith.constant 0 : index
    %c0_33 = arith.constant 0 : index
    %53 = vector.load %arg10[%c0_32, %c0_33] : memref<8x128xf32, #tpu.memory_space<vmem>>, vector<8x128xf32>
    tpu.vector_store %arg10[%c0_32, %c0_33], %52 {strides = array<i32>} : memref<8x128xf32, #tpu.memory_space<vmem>>, vector<8x128xf32>,
    return
  }
  func.func @transform_0(%arg0: i32) -> (i32, i32) {
    %c0_i32 = arith.constant 0 : i32
    %c0_i32_0 = arith.constant 0 : i32
    return %arg0, %c0_i32 : i32, i32
  }
  func.func @transform_1(%arg0: i32) -> (i32, i32) {
    %c0_i32 = arith.constant 0 : i32
    %c0_i32_0 = arith.constant 0 : i32
    %c0_i32_1 = arith.constant 0 : i32
    return %c0_i32, %c0_i32_0 : i32, i32
  }
  func.func @transform_2(%arg0: i32) -> (i32, i32) {
    %c0_i32 = arith.constant 0 : i32
    %c0_i32_0 = arith.constant 0 : i32
    %c0_i32_1 = arith.constant 0 : i32
    return %c0_i32, %c0_i32_0 : i32, i32
  }
  func.func @transform_3(%arg0: i32) -> (i32, i32) {
    %c0_i32 = arith.constant 0 : i32
    %c0_i32_0 = arith.constant 0 : i32
    %c0_i32_1 = arith.constant 0 : i32
    return %c0_i32, %c0_i32_0 : i32, i32
  }
  func.func @transform_4(%arg0: i32) -> (i32, i32) {
    %c0_i32 = arith.constant 0 : i32
    %c0_i32_0 = arith.constant 0 : i32
    %c0_i32_1 = arith.constant 0 : i32
    return %c0_i32, %c0_i32_0 : i32, i32
  }
  func.func @transform_5(%arg0: i32) -> (i32, i32) {
    %c0_i32 = arith.constant 0 : i32
    %c0_i32_0 = arith.constant 0 : i32
    %c0_i32_1 = arith.constant 0 : i32
    return %c0_i32, %c0_i32_0 : i32, i32
  }
  func.func @transform_6(%arg0: i32) -> (i32, i32) {
    %c0_i32 = arith.constant 0 : i32
    %c0_i32_0 = arith.constant 0 : i32
    %c0_i32_1 = arith.constant 0 : i32
    return %c0_i32, %c0_i32_0 : i32, i32
  }
  func.func @transform_7(%arg0: i32) -> (i32, i32) {
    %c0_i32 = arith.constant 0 : i32
    %c0_i32_0 = arith.constant 0 : i32
    %c0_i32_1 = arith.constant 0 : i32
    return %c0_i32, %c0_i32_0 : i32, i32
  }
  func.func @transform_8(%arg0: i32) -> (i32, i32) {
    %c0_i32 = arith.constant 0 : i32
    %c0_i32_0 = arith.constant 0 : i32
    %c0_i32_1 = arith.constant 0 : i32
    return %c0_i32, %c0_i32_0 : i32, i32
  }
  func.func @transform_9(%arg0: i32) -> (i32, i32) {
    %c0_i32 = arith.constant 0 : i32
    %c0_i32_0 = arith.constant 0 : i32
    return %arg0, %c0_i32 : i32, i32
  }
}

</mosaic_0001>

<llo_original>
// kernel: tpu_custom_call.1
$region0: #{tpu_custom_call.1}
  #allocation0 [shape = 'u32[]', space=smem, size = 0x4, offset = 0x4, fixed_abs, tag = 'smem constant byte address 0x4 - core index']
  #allocation1 [shape = 'u32[144,128]{1,0:T(1,128)}', space=vmem, size = 0x12000, scoped, tag = 'internal scratch']
  %s0 = inlined_call_operand.vmem [shape: f32[8,32], index: 0, kind: input, shape index: {}]
  %s1 = inlined_call_operand.vmem [shape: f32[32,16], index: 1, kind: input, shape index: {}]
  %s2 = inlined_call_operand.vmem [shape: f32[1,16], index: 2, kind: input, shape index: {}]
  %s3 = inlined_call_operand.vmem [shape: f32[16,8], index: 3, kind: input, shape index: {}]
  %s4 = inlined_call_operand.vmem [shape: f32[1,8], index: 4, kind: input, shape index: {}]
  %s5 = inlined_call_operand.vmem [shape: f32[8,16], index: 5, kind: input, shape index: {}]
  %s6 = inlined_call_operand.vmem [shape: f32[1,16], index: 6, kind: input, shape index: {}]
  %s7 = inlined_call_operand.vmem [shape: f32[16,128], index: 7, kind: input, shape index: {}]
  %s8 = inlined_call_operand.vmem [shape: f32[1,128], index: 8, kind: input, shape index: {}]
  %s9 = inlined_call_operand.hbm [shape: f32[8,128], index: 9, kind: output, shape index: {}]
  %s10 = sld [smem:[#allocation0]]
  $region46: #{tpu_custom_call.1} parent=0
    _
  %s12 = ssub.s32 1, %s10
  %s13 = scalar_select 0, %s12, %s10
  $region1: #{tpu_custom_call.1} parent=0
    #allocation2 [shape = 'u8[4096]{0}', space=vmem, size = 0x1000, scoped, tag = 'output window, operand 0, single buffered']
    #allocation3 [shape = 's32[1]{0}', space=sflag, size = 0x4, scoped, tag = 'scoped memory for tpu_custom_call.1']
    %14 = vsyncpa [#allocation3], 0
    // Predicated region
    $region2: #{tpu_custom_call.1} parent=1 // pred_check
      _
    $region3: #{tpu_custom_call.1} parent=1 // pred_check_branch
      %16 = sbr.rel (0) target = $region5
    $region4: #{tpu_custom_call.1} parent=1 // pred_region
      _
    $region5: #{tpu_custom_call.1} parent=1 // pred_fallthru
      _
    // Predicated region
    $region6: #{tpu_custom_call.1} parent=1 // pred_check
      _
    $region7: #{tpu_custom_call.1} parent=1 // pred_check_branch
      %18 = sbr.rel (0) target = $region9
    $region8: #{tpu_custom_call.1} parent=1 // pred_region
      _
    $region9: #{tpu_custom_call.1} parent=1 // pred_fallthru
      _
    // Predicated region
    $region10: #{tpu_custom_call.1} parent=1 // pred_check
      _
    $region11: #{tpu_custom_call.1} parent=1 // pred_check_branch
      %20 = sbr.rel (0) target = $region13
    $region12: #{tpu_custom_call.1} parent=1 // pred_region
      _
    $region13: #{tpu_custom_call.1} parent=1 // pred_fallthru
      _
    // Predicated region
    $region14: #{tpu_custom_call.1} parent=1 // pred_check
      _
    $region15: #{tpu_custom_call.1} parent=1 // pred_check_branch
      %22 = sbr.rel (0) target = $region17
    $region16: #{tpu_custom_call.1} parent=1 // pred_region
      _
    $region17: #{tpu_custom_call.1} parent=1 // pred_fallthru
      _
    // Predicated region
    $region18: #{tpu_custom_call.1} parent=1 // pred_check
      _
    $region19: #{tpu_custom_call.1} parent=1 // pred_check_branch
      %24 = sbr.rel (0) target = $region21
    $region20: #{tpu_custom_call.1} parent=1 // pred_region
      _
    $region21: #{tpu_custom_call.1} parent=1 // pred_fallthru
      _
    // Predicated region
    $region22: #{tpu_custom_call.1} parent=1 // pred_check
      _
    $region23: #{tpu_custom_call.1} parent=1 // pred_check_branch
      %26 = sbr.rel (0) target = $region25
    $region24: #{tpu_custom_call.1} parent=1 // pred_region
      _
    $region25: #{tpu_custom_call.1} parent=1 // pred_fallthru
      _
    // Predicated region
    $region26: #{tpu_custom_call.1} parent=1 // pred_check
      _
    $region27: #{tpu_custom_call.1} parent=1 // pred_check_branch
      %28 = sbr.rel (0) target = $region29
    $region28: #{tpu_custom_call.1} parent=1 // pred_region
      _
    $region29: #{tpu_custom_call.1} parent=1 // pred_fallthru
      _
    // Predicated region
    $region30: #{tpu_custom_call.1} parent=1 // pred_check
      _
    $region31: #{tpu_custom_call.1} parent=1 // pred_check_branch
      %30 = sbr.rel (0) target = $region33
    $region32: #{tpu_custom_call.1} parent=1 // pred_region
      _
    $region33: #{tpu_custom_call.1} parent=1 // pred_fallthru
      _
    // Predicated region
    $region34: #{tpu_custom_call.1} parent=1 // pred_check
      _
    $region35: #{tpu_custom_call.1} parent=1 // pred_check_branch
      %32 = sbr.rel (0) target = $region37
    $region36: #{tpu_custom_call.1} parent=1 // pred_region
      _
    $region37: #{tpu_custom_call.1} parent=1 // pred_fallthru
      _
    %v33 = vld [vmem:[%s0] sm:$0xff]
    %v34 = vld [vmem:[%s1] sm:$0xff]
    %v35 = vld [vmem:[%s1 + $0x8] sm:$0xff]
    %v36 = vld [vmem:[%s1 + $0x10] sm:$0xff]
    %v37 = vld [vmem:[%s1 + $0x18] sm:$0xff]
    %v38 = vld [vmem:[%s2] sm:$0x1]
    %v40 = vlaneseq
    %v41 = vshrl.u32 %v40, 7
    %v42 = vsub.s32 0, %v41
    %v43 = vrot.slane %v38, %v42
    %vm45 = vcmask 261120
    %v47 = vsel %vm45, %v33, 0
    %49 = vmatprep.subr.mxu0 0.0
    %50 = vmatpush1.msra.mxu0 %v34
    %51 = vmatprep.subr.mxu0 0.0
    %52 = vmatpush1.msra.mxu0 %v35
    %53 = vmatprep.subr.mxu0 0.0
    %54 = vmatpush1.msra.mxu0 %v36
    %55 = vmatprep.subr.mxu0 0.0
    %56 = vmatpush1.msra.mxu0 %v37
    %57 = vmatprep.subr.mxu0 0.0
    %58 = vmatpush1.msra.mxu0 0.0
    %59 = vmatprep.subr.mxu0 0.0
    %60 = vmatpush1.msra.mxu0 0.0
    %61 = vmatprep.subr.mxu0 0.0
    %62 = vmatpush1.msra.mxu0 0.0
    %63 = vmatprep.subr.mxu0 0.0
    %64 = vmatpush1.msra.mxu0 0.0
    %65 = vmatprep.subr.mxu0 0.0
    %66 = vmatpush1.msra.mxu0 0.0
    %67 = vmatprep.subr.mxu0 0.0
    %68 = vmatpush1.msra.mxu0 0.0
    %69 = vmatprep.subr.mxu0 0.0
    %70 = vmatpush1.msra.mxu0 0.0
    %71 = vmatprep.subr.mxu0 0.0
    %72 = vmatpush1.msra.mxu0 0.0
    %73 = vmatprep.subr.mxu0 0.0
    %74 = vmatpush1.msra.mxu0 0.0
    %75 = vmatprep.subr.mxu0 0.0
    %76 = vmatpush1.msra.mxu0 0.0
    %77 = vmatprep.subr.mxu0 0.0
    %78 = vmatpush1.msra.mxu0 0.0
    %79 = vmatprep.subr.mxu0 0.0
    %80 = vmatpush1.msra.mxu0 0.0
    %81 = vmatprep.subr.mxu0 0.0
    %82 = vmatpush1.msra.mxu0 0.0
    %83 = vmatprep.subr.mxu0 0.0
    %84 = vmatpush1.msra.mxu0 0.0
    %85 = vmatprep.subr.mxu0 0.0
    %86 = vmatpush1.msra.mxu0 0.0
    %87 = vmatprep.subr.mxu0 0.0
    %88 = vmatpush1.msra.mxu0 0.0
    %89 = vmatprep.subr.mxu0 0.0
    %90 = vmatpush1.msra.mxu0 0.0
    %91 = vmatprep.subr.mxu0 0.0
    %92 = vmatpush1.msra.mxu0 0.0
    %93 = vmatprep.subr.mxu0 0.0
    %94 = vmatpush1.msra.mxu0 0.0
    %95 = vmatprep.subr.mxu0 0.0
    %96 = vmatpush1.msra.mxu0 0.0
    %97 = vmatprep.subr.mxu0 0.0
    %98 = vmatpush1.msra.mxu0 0.0
    %99 = vmatprep.subr.mxu0 0.0
    %100 = vmatpush1.msra.mxu0 0.0
    %101 = vmatprep.subr.mxu0 0.0
    %102 = vmatpush1.msra.mxu0 0.0
    %103 = vmatprep.subr.mxu0 0.0
    %104 = vmatpush1.msra.mxu0 0.0
    %105 = vmatprep.subr.mxu0 0.0
    %106 = vmatpush1.msra.mxu0 0.0
    %107 = vmatprep.subr.mxu0 0.0
    %108 = vmatpush1.msra.mxu0 0.0
    %109 = vmatprep.subr.mxu0 0.0
    %110 = vmatpush1.msra.mxu0 0.0
    %111 = vmatprep.subr.mxu0 0.0
    %112 = vmatpush1.msra.mxu0 0.0
    %113 = vmatprep.mubr.f32.mxu0 0.0
    %114 = vmatmul.mubr.f32.gmra.mrb[0].mxu0 %v47
    %v115 = vpop.f32.mrb[0].mxu0
    %v116 = vadd.f32 %v43, %v115
    %v117 = vpop.f32.mrb[0].mxu0
    %118 = vdwg.mxu0
    %vm119 = vcmp.gt.f32.partialorder %v116, 0.0
    %v120 = vmin.f32 %v116, 0.0
    %v121 = vmul.f32 %v120, 1.442695
    %v122 = vpow.pop %v121
    %v123 = vsub.f32 %v122, 1.0
    %v124 = vsel %vm119, %v116, %v123
    %v125 = vld [vmem:[%s3] sm:$0xff]
    %v126 = vld [vmem:[%s3 + $0x8] sm:$0xff]
    %v127 = vld [vmem:[%s4] sm:$0x1]
    %v129 = vlaneseq
    %v130 = vshrl.u32 %v129, 7
    %v131 = vsub.s32 0, %v130
    %v132 = vrot.slane %v127, %v131
    %vm134 = vcmask 130048
    %v136 = vsel %vm134, %v124, 0
    %138 = vmatprep.subr.mxu0 0.0
    %139 = vmatpush1.msra.mxu0 %v125
    %140 = vmatprep.subr.mxu0 0.0
    %141 = vmatpush1.msra.mxu0 %v126
    %142 = vmatprep.subr.mxu0 0.0
    %143 = vmatpush1.msra.mxu0 0.0
    %144 = vmatprep.subr.mxu0 0.0
    %145 = vmatpush1.msra.mxu0 0.0
    %146 = vmatprep.subr.mxu0 0.0
    %147 = vmatpush1.msra.mxu0 0.0
    %148 = vmatprep.subr.mxu0 0.0
    %149 = vmatpush1.msra.mxu0 0.0
    %150 = vmatprep.subr.mxu0 0.0
    %151 = vmatpush1.msra.mxu0 0.0
    %152 = vmatprep.subr.mxu0 0.0
    %153 = vmatpush1.msra.mxu0 0.0
    %154 = vmatprep.subr.mxu0 0.0
    %155 = vmatpush1.msra.mxu0 0.0
    %156 = vmatprep.subr.mxu0 0.0
    %157 = vmatpush1.msra.mxu0 0.0
    %158 = vmatprep.subr.mxu0 0.0
    %159 = vmatpush1.msra.mxu0 0.0
    %160 = vmatprep.subr.mxu0 0.0
    %161 = vmatpush1.msra.mxu0 0.0
    %162 = vmatprep.subr.mxu0 0.0
    %163 = vmatpush1.msra.mxu0 0.0
    %164 = vmatprep.subr.mxu0 0.0
    %165 = vmatpush1.msra.mxu0 0.0
    %166 = vmatprep.subr.mxu0 0.0
    %167 = vmatpush1.msra.mxu0 0.0
    %168 = vmatprep.subr.mxu0 0.0
    %169 = vmatpush1.msra.mxu0 0.0
    %170 = vmatprep.subr.mxu0 0.0
    %171 = vmatpush1.msra.mxu0 0.0
    %172 = vmatprep.subr.mxu0 0.0
    %173 = vmatpush1.msra.mxu0 0.0
    %174 = vmatprep.subr.mxu0 0.0
    %175 = vmatpush1.msra.mxu0 0.0
    %176 = vmatprep.subr.mxu0 0.0
    %177 = vmatpush1.msra.mxu0 0.0
    %178 = vmatprep.subr.mxu0 0.0
    %179 = vmatpush1.msra.mxu0 0.0
    %180 = vmatprep.subr.mxu0 0.0
    %181 = vmatpush1.msra.mxu0 0.0
    %182 = vmatprep.subr.mxu0 0.0
    %183 = vmatpush1.msra.mxu0 0.0
    %184 = vmatprep.subr.mxu0 0.0
    %185 = vmatpush1.msra.mxu0 0.0
    %186 = vmatprep.subr.mxu0 0.0
    %187 = vmatpush1.msra.mxu0 0.0
    %188 = vmatprep.subr.mxu0 0.0
    %189 = vmatpush1.msra.mxu0 0.0
    %190 = vmatprep.subr.mxu0 0.0
    %191 = vmatpush1.msra.mxu0 0.0
    %192 = vmatprep.subr.mxu0 0.0
    %193 = vmatpush1.msra.mxu0 0.0
    %194 = vmatprep.subr.mxu0 0.0
    %195 = vmatpush1.msra.mxu0 0.0
    %196 = vmatprep.subr.mxu0 0.0
    %197 = vmatpush1.msra.mxu0 0.0
    %198 = vmatprep.subr.mxu0 0.0
    %199 = vmatpush1.msra.mxu0 0.0
    %200 = vmatprep.subr.mxu0 0.0
    %201 = vmatpush1.msra.mxu0 0.0
    %202 = vmatprep.mubr.f32.mxu0 0.0
    %203 = vmatmul.mubr.f32.gmra.mrb[0].mxu0 %v136
    %v204 = vpop.f32.mrb[0].mxu0
    %v205 = vadd.f32 %v132, %v204
    %v206 = vpop.f32.mrb[0].mxu0
    %207 = vdwg.mxu0
    %vm208 = vcmp.gt.f32.partialorder %v205, 0.0
    %v209 = vmin.f32 %v205, 0.0
    %v210 = vmul.f32 %v209, 1.442695
    %v211 = vpow.pop %v210
    %v212 = vsub.f32 %v211, 1.0
    %v213 = vsel %vm208, %v205, %v212
    %v214 = vld [vmem:[%s5] sm:$0xff]
    %v215 = vld [vmem:[%s6] sm:$0x1]
    %v217 = vlaneseq
    %v218 = vshrl.u32 %v217, 7
    %v219 = vsub.s32 0, %v218
    %v220 = vrot.slane %v215, %v219
    %vm222 = vcmask 64512
    %v224 = vsel %vm222, %v213, 0
    %226 = vmatprep.subr.mxu0 0.0
    %227 = vmatpush1.msra.mxu0 %v214
    %228 = vmatprep.subr.mxu0 0.0
    %229 = vmatpush1.msra.mxu0 0.0
    %230 = vmatprep.subr.mxu0 0.0
    %231 = vmatpush1.msra.mxu0 0.0
    %232 = vmatprep.subr.mxu0 0.0
    %233 = vmatpush1.msra.mxu0 0.0
    %234 = vmatprep.subr.mxu0 0.0
    %235 = vmatpush1.msra.mxu0 0.0
    %236 = vmatprep.subr.mxu0 0.0
    %237 = vmatpush1.msra.mxu0 0.0
    %238 = vmatprep.subr.mxu0 0.0
    %239 = vmatpush1.msra.mxu0 0.0
    %240 = vmatprep.subr.mxu0 0.0
    %241 = vmatpush1.msra.mxu0 0.0
    %242 = vmatprep.subr.mxu0 0.0
    %243 = vmatpush1.msra.mxu0 0.0
    %244 = vmatprep.subr.mxu0 0.0
    %245 = vmatpush1.msra.mxu0 0.0
    %246 = vmatprep.subr.mxu0 0.0
    %247 = vmatpush1.msra.mxu0 0.0
    %248 = vmatprep.subr.mxu0 0.0
    %249 = vmatpush1.msra.mxu0 0.0
    %250 = vmatprep.subr.mxu0 0.0
    %251 = vmatpush1.msra.mxu0 0.0
    %252 = vmatprep.subr.mxu0 0.0
    %253 = vmatpush1.msra.mxu0 0.0
    %254 = vmatprep.subr.mxu0 0.0
    %255 = vmatpush1.msra.mxu0 0.0
    %256 = vmatprep.subr.mxu0 0.0
    %257 = vmatpush1.msra.mxu0 0.0
    %258 = vmatprep.subr.mxu0 0.0
    %259 = vmatpush1.msra.mxu0 0.0
    %260 = vmatprep.subr.mxu0 0.0
    %261 = vmatpush1.msra.mxu0 0.0
    %262 = vmatprep.subr.mxu0 0.0
    %263 = vmatpush1.msra.mxu0 0.0
    %264 = vmatprep.subr.mxu0 0.0
    %265 = vmatpush1.msra.mxu0 0.0
    %266 = vmatprep.subr.mxu0 0.0
    %267 = vmatpush1.msra.mxu0 0.0
    %268 = vmatprep.subr.mxu0 0.0
    %269 = vmatpush1.msra.mxu0 0.0
    %270 = vmatprep.subr.mxu0 0.0
    %271 = vmatpush1.msra.mxu0 0.0
    %272 = vmatprep.subr.mxu0 0.0
    %273 = vmatpush1.msra.mxu0 0.0
    %274 = vmatprep.subr.mxu0 0.0
    %275 = vmatpush1.msra.mxu0 0.0
    %276 = vmatprep.subr.mxu0 0.0
    %277 = vmatpush1.msra.mxu0 0.0
    %278 = vmatprep.subr.mxu0 0.0
    %279 = vmatpush1.msra.mxu0 0.0
    %280 = vmatprep.subr.mxu0 0.0
    %281 = vmatpush1.msra.mxu0 0.0
    %282 = vmatprep.subr.mxu0 0.0
    %283 = vmatpush1.msra.mxu0 0.0
    %284 = vmatprep.subr.mxu0 0.0
    %285 = vmatpush1.msra.mxu0 0.0
    %286 = vmatprep.subr.mxu0 0.0
    %287 = vmatpush1.msra.mxu0 0.0
    %288 = vmatprep.subr.mxu0 0.0
    %289 = vmatpush1.msra.mxu0 0.0
    %290 = vmatprep.mubr.f32.mxu0 0.0
    %291 = vmatmul.mubr.f32.gmra.mrb[0].mxu0 %v224
    %v292 = vpop.f32.mrb[0].mxu0
    %v293 = vadd.f32 %v220, %v292
    %v294 = vpop.f32.mrb[0].mxu0
    %295 = vdwg.mxu0
    %vm296 = vcmp.gt.f32.partialorder %v293, 0.0
    %v297 = vmin.f32 %v293, 0.0
    %v298 = vmul.f32 %v297, 1.442695
    %v299 = vpow.pop %v298
    %v300 = vsub.f32 %v299, 1.0
    %v301 = vsel %vm296, %v293, %v300
    %v302 = vld [vmem:[%s7] sm:$0xff]
    %v303 = vld [vmem:[%s7 + $0x8] sm:$0xff]
    %v304 = vld [vmem:[%s8] sm:$0x1]
    %v306 = vlaneseq
    %v307 = vshrl.u32 %v306, 7
    %v308 = vsub.s32 0, %v307
    %v309 = vrot.slane %v304, %v308
    %v312 = vsel %vm134, %v301, 0
    %314 = vmatprep.subr.mxu0 0.0
    %315 = vmatpush1.msra.mxu0 %v302
    %316 = vmatprep.subr.mxu0 0.0
    %317 = vmatpush1.msra.mxu0 %v303
    %318 = vmatprep.subr.mxu0 0.0
    %319 = vmatpush1.msra.mxu0 0.0
    %320 = vmatprep.subr.mxu0 0.0
    %321 = vmatpush1.msra.mxu0 0.0
    %322 = vmatprep.subr.mxu0 0.0
    %323 = vmatpush1.msra.mxu0 0.0
    %324 = vmatprep.subr.mxu0 0.0
    %325 = vmatpush1.msra.mxu0 0.0
    %326 = vmatprep.subr.mxu0 0.0
    %327 = vmatpush1.msra.mxu0 0.0
    %328 = vmatprep.subr.mxu0 0.0
    %329 = vmatpush1.msra.mxu0 0.0
    %330 = vmatprep.subr.mxu0 0.0
    %331 = vmatpush1.msra.mxu0 0.0
    %332 = vmatprep.subr.mxu0 0.0
    %333 = vmatpush1.msra.mxu0 0.0
    %334 = vmatprep.subr.mxu0 0.0
    %335 = vmatpush1.msra.mxu0 0.0
    %336 = vmatprep.subr.mxu0 0.0
    %337 = vmatpush1.msra.mxu0 0.0
    %338 = vmatprep.subr.mxu0 0.0
    %339 = vmatpush1.msra.mxu0 0.0
    %340 = vmatprep.subr.mxu0 0.0
    %341 = vmatpush1.msra.mxu0 0.0
    %342 = vmatprep.subr.mxu0 0.0
    %343 = vmatpush1.msra.mxu0 0.0
    %344 = vmatprep.subr.mxu0 0.0
    %345 = vmatpush1.msra.mxu0 0.0
    %346 = vmatprep.subr.mxu0 0.0
    %347 = vmatpush1.msra.mxu0 0.0
    %348 = vmatprep.subr.mxu0 0.0
    %349 = vmatpush1.msra.mxu0 0.0
    %350 = vmatprep.subr.mxu0 0.0
    %351 = vmatpush1.msra.mxu0 0.0
    %352 = vmatprep.subr.mxu0 0.0
    %353 = vmatpush1.msra.mxu0 0.0
    %354 = vmatprep.subr.mxu0 0.0
    %355 = vmatpush1.msra.mxu0 0.0
    %356 = vmatprep.subr.mxu0 0.0
    %357 = vmatpush1.msra.mxu0 0.0
    %358 = vmatprep.subr.mxu0 0.0
    %359 = vmatpush1.msra.mxu0 0.0
    %360 = vmatprep.subr.mxu0 0.0
    %361 = vmatpush1.msra.mxu0 0.0
    %362 = vmatprep.subr.mxu0 0.0
    %363 = vmatpush1.msra.mxu0 0.0
    %364 = vmatprep.subr.mxu0 0.0
    %365 = vmatpush1.msra.mxu0 0.0
    %366 = vmatprep.subr.mxu0 0.0
    %367 = vmatpush1.msra.mxu0 0.0
    %368 = vmatprep.subr.mxu0 0.0
    %369 = vmatpush1.msra.mxu0 0.0
    %370 = vmatprep.subr.mxu0 0.0
    %371 = vmatpush1.msra.mxu0 0.0
    %372 = vmatprep.subr.mxu0 0.0
    %373 = vmatpush1.msra.mxu0 0.0
    %374 = vmatprep.subr.mxu0 0.0
    %375 = vmatpush1.msra.mxu0 0.0
    %376 = vmatprep.subr.mxu0 0.0
    %377 = vmatpush1.msra.mxu0 0.0
    %378 = vmatprep.mubr.f32.mxu0 0.0
    %379 = vmatmul.mubr.f32.gmra.mrb[0].mxu0 %v312
    %v380 = vpop.f32.mrb[0].mxu0
    %v381 = vadd.f32 %v309, %v380
    %v382 = vpop.f32.mrb[0].mxu0
    %383 = vdwg.mxu0
    %vm384 = vcmp.gt.f32.partialorder %v381, 0.0
    %v385 = vmin.f32 %v381, 0.0
    %v386 = vmul.f32 %v385, 1.442695
    %v387 = vpow.pop %v386
    %v388 = vsub.f32 %v387, 1.0
    %v389 = vsel %vm384, %v381, %v388
    %390 = vst [vmem:[#allocation2] sm:$0xff] %v389
    // Predicated region
    $region38: #{tpu_custom_call.1} parent=1 // pred_check
      _
    $region39: #{tpu_custom_call.1} parent=1 // pred_check_branch
      %392 = sbr.rel (0) target = $region41
    $region40: #{tpu_custom_call.1} parent=1 // pred_region
      %s394 = ssub.s32 128, 128
      %395 = vsyncadd [#allocation3], %s394
      %s397 = sshll.u32 [#allocation2], 4
      %s398 = int_to_ptr.vmem [resolvable:$true] %s397
      %400 = dma.vmem_to_hbm [thread:$0]  %s398, 128, %s9, [#allocation3]
    $region41: #{tpu_custom_call.1} parent=1 // pred_fallthru
      _
    // Predicated region
    $region42: #{tpu_custom_call.1} parent=1 // pred_check
      _
    $region43: #{tpu_custom_call.1} parent=1 // pred_check_branch
      %402 = sbr.rel (0) target = $region45
    $region44: #{tpu_custom_call.1} parent=1 // pred_region
      %403 = dma.done [#allocation3], 128
    $region45: #{tpu_custom_call.1} parent=1 // pred_fallthru
      _
    %404 = vsyncpa [#allocation3], 1

</llo_original>
